<compile_context>
chip_gen: v7x
topology: tpu7x:2x2x1
jax: 0.10.0
libtpu: 0.0.40
codegen_flags: <defaults>
</compile_context>

<pallas_src>
import functools

import jax
import jax.numpy as jnp
import numpy as np
from jax.experimental import pallas as pl
from jax.experimental.pallas import tpu as pltpu


def _round_up(v, m):
    return ((v + m - 1) // m) * m


def split_embedding_kernel(
    x_ref,
    w1_ref, b1_ref,          # encoder layer 1 (both branches): (input_dim, 2H), (1, 2H)
    w2_ref, b2_ref,          # encoder layer 2 block-diag:      (2H, input_dim), (1, input_dim)
    w3_ref, b3_ref,          # decoder-1 + disc-1 fused:        (input_dim, 2H), (1, 2H)
    w4_ref, b4_ref,          # decoder-2 + disc-2 block-diag:   (2H, input_dim+known_dim)
    out_ref,                 # packed (bm, slab_w) output slab
    *, pad_w,
):
    x = x_ref[...]

    # ---- matmul 1: fused encoder layer 1 (shared LHS) ----
    h1 = jnp.maximum(
        jnp.dot(x, w1_ref[...], preferred_element_type=jnp.float32) + b1_ref[...],
        0.0)

    # ---- matmul 2: block-diagonal encoder layer 2 -> combined = [known|unknown] ----
    combined = jnp.tanh(
        jnp.dot(h1, w2_ref[...], preferred_element_type=jnp.float32) + b2_ref[...])

    # ---- matmul 3: decoder layer 1 + discriminator layer 1 fused along N ----
    # Gradient reversal is identity in the forward pass (custom-VJP concern only).
    # TODO(synk): differentiating this pallas_call needs a custom VJP (incl. -lambda*grad).
    h2 = jnp.maximum(
        jnp.dot(combined, w3_ref[...], preferred_element_type=jnp.float32)
        + b3_ref[...], 0.0)

    # ---- matmul 4: block-diagonal decoder-2 / discriminator-2 -> [recon | disc] ----
    recon_disc = (jnp.dot(h2, w4_ref[...], preferred_element_type=jnp.float32)
                  + b4_ref[...])

    # ---- single lane-dense packed store: [combined | recon_disc | pad] ----
    pieces = [combined, recon_disc]
    if pad_w > 0:
        pieces.append(jnp.zeros((combined.shape[0], pad_w), jnp.float32))
    out_ref[...] = jnp.concatenate(pieces, axis=-1)


def split_embedding_forward(x, params, known_dim, hidden_dim, *, bm=2048,
                            return_packed=False):
    """params = (wk1,bk1,wk2,bk2, wu1,bu1,wu2,bu2, wd1,bd1,wd2,bd2, wa1,ba1,wa2,ba2)

    Returns (known, unknown, reconstructed, combined, discriminator_output),
    or (slab, offsets) if return_packed=True (avoids wrapper-side re-slicing HBM traffic).
    """
    B, input_dim = x.shape
    f32 = jnp.float32

    (wk1, bk1, wk2, bk2, wu1, bu1, wu2, bu2,
     wd1, bd1, wd2, bd2, wa1, ba1, wa2, ba2) = params

    # ---- parameter fusion (pure layout prep, done once in the wrapper) ----
    # encoder layer 1: shared LHS -> concatenate along N
    w1 = jnp.concatenate([wk1, wu1], axis=1).astype(f32)            # (input_dim, 2H)
    b1 = jnp.concatenate([bk1, bu1], axis=1).astype(f32)            # (1, 2H)
    # encoder layer 2: block-diagonal -> combined directly
    w2 = jnp.zeros((2 * hidden_dim, input_dim), f32)
    w2 = w2.at[:hidden_dim, :known_dim].set(wk2)
    w2 = w2.at[hidden_dim:, known_dim:].set(wu2)
    b2 = jnp.concatenate([bk2, bu2], axis=1).astype(f32)            # (1, input_dim)
    # decoder layer 1 + discriminator layer 1: zero-pad wa1's first known_dim rows
    wa1_pad = jnp.concatenate(
        [jnp.zeros((known_dim, hidden_dim), f32), wa1.astype(f32)], axis=0)
    w3 = jnp.concatenate([wd1, wa1_pad], axis=1).astype(f32)        # (input_dim, 2H)
    b3 = jnp.concatenate([bd1, ba1], axis=1).astype(f32)            # (1, 2H)
    # decoder layer 2 + discriminator layer 2: block-diagonal -> [recon | disc]
    w4 = jnp.zeros((2 * hidden_dim, input_dim + known_dim), f32)
    w4 = w4.at[:hidden_dim, :input_dim].set(wd2)
    w4 = w4.at[hidden_dim:, input_dim:].set(wa2)
    b4 = jnp.concatenate([bd2, ba2], axis=1).astype(f32)            # (1, input_dim+known_dim)

    kernel_params = (w1, b1, w2, b2, w3, b3, w4, b4)

    # ---- packed output slab geometry (pad to a multiple of 128 lanes) ----
    payload = 2 * input_dim + known_dim                             # combined + recon + disc
    slab_w = _round_up(payload, 128)
    pad_w = slab_w - payload

    # ---- VMEM budget: v7x has 64 MiB physical, v5e/v6e have 128 MiB ----
    try:
        phys_vmem = int(pltpu.get_tpu_info().vmem_capacity_bytes)
    except Exception:
        phys_vmem = 64 * 1024 * 1024                                # conservative (v7x)
    vmem_limit = min(int(phys_vmem * 3 // 4), 96 * 1024 * 1024)     # ~48 MiB v7x, 96 MiB v6e/v5e
    budget = vmem_limit - 4 * 1024 * 1024                           # headroom

    # ---- batch tiling: large tile, VMEM-clamped, multiple of 8, >=2 tiles when possible ----
    bytes_per_row = 4 * (input_dim + slab_w)                        # x tile + out tile, per row
    weight_bytes = 4 * sum(int(np.prod(p.shape)) for p in kernel_params)
    cap = max(8, (budget - 2 * weight_bytes) // (2 * bytes_per_row))  # double-buffered
    bm = min(bm, cap, _round_up(B, 8))
    bm = max(8, (bm // 8) * 8)
    if B >= 16 and -(-B // bm) < 2:
        # give v7x's second TensorCore something to do
        bm = _round_up(-(-B // 2), 8)
    grid = (pl.cdiv(B, bm),)

    in_specs = [pl.BlockSpec((bm, input_dim), lambda i: (i, 0))]
    in_specs += [pl.BlockSpec(p.shape, lambda i: (0, 0)) for p in kernel_params]
    out_specs = pl.BlockSpec((bm, slab_w), lambda i: (i, 0))
    out_shape = jax.ShapeDtypeStruct((B, slab_w), jnp.float32)      # no wrapper jnp.pad of x

    slab = pl.pallas_call(
        functools.partial(split_embedding_kernel, pad_w=pad_w),
        out_shape=out_shape,
        grid_spec=pl.GridSpec(grid=grid, in_specs=in_specs, out_specs=out_specs),
        compiler_params=pltpu.CompilerParams(
            dimension_semantics=("parallel",),                      # shard batch tiles on v7x
            vmem_limit_bytes=vmem_limit),
    )(x.astype(f32), *kernel_params)

    if return_packed:
        offsets = {"known": (0, known_dim),
                   "unknown": (known_dim, input_dim),
                   "combined": (0, input_dim),
                   "reconstructed": (input_dim, 2 * input_dim),
                   "discriminator": (2 * input_dim, payload)}
        return slab, offsets

    combined = slab[:, :input_dim]
    known = combined[:, :known_dim]
    unknown = combined[:, known_dim:]
    recon = slab[:, input_dim:2 * input_dim]
    disc = slab[:, 2 * input_dim:payload]
    return known, unknown, recon, combined, disc


def ref_forward(x, params):
    (wk1, bk1, wk2, bk2, wu1, bu1, wu2, bu2,
     wd1, bd1, wd2, bd2, wa1, ba1, wa2, ba2) = params
    hk = jnp.maximum(x @ wk1 + bk1, 0.0)
    known = jnp.tanh(hk @ wk2 + bk2)
    hu = jnp.maximum(x @ wu1 + bu1, 0.0)
    unknown = jnp.tanh(hu @ wu2 + bu2)
    combined = jnp.concatenate([known, unknown], axis=-1)
    recon = jnp.maximum(combined @ wd1 + bd1, 0.0) @ wd2 + bd2
    disc = jnp.maximum(unknown @ wa1 + ba1, 0.0) @ wa2 + ba2
    return known, unknown, recon, combined, disc


if __name__ == "__main__":
    key = jax.random.PRNGKey(0)

    B, input_dim, known_dim, hidden_dim = 8, 32, 16, 32
    unknown_dim = input_dim - known_dim

    def make_linear(k, din, dout):
        kw, kb = jax.random.split(k)
        lim = 1.0 / jnp.sqrt(din)
        w = jax.random.uniform(kw, (din, dout), jnp.float32, -lim, lim)
        b = jax.random.uniform(kb, (1, dout), jnp.float32, -lim, lim)
        return w, b

    keys = jax.random.split(key, 9)
    x = jax.random.normal(keys[0], (B, input_dim), jnp.float32)

    wk1, bk1 = make_linear(keys[1], input_dim, hidden_dim)
    wk2, bk2 = make_linear(keys[2], hidden_dim, known_dim)
    wu1, bu1 = make_linear(keys[3], input_dim, hidden_dim)
    wu2, bu2 = make_linear(keys[4], hidden_dim, unknown_dim)
    wd1, bd1 = make_linear(keys[5], known_dim + unknown_dim, hidden_dim)
    wd2, bd2 = make_linear(keys[6], hidden_dim, input_dim)
    wa1, ba1 = make_linear(keys[7], unknown_dim, hidden_dim)
    wa2, ba2 = make_linear(keys[8], hidden_dim, known_dim)

    params = (wk1, bk1, wk2, bk2, wu1, bu1, wu2, bu2,
              wd1, bd1, wd2, bd2, wa1, ba1, wa2, ba2)

    outs = split_embedding_forward(x, params, known_dim, hidden_dim)
    outs = jax.block_until_ready(outs)

    refs = ref_forward(x, params)
    for got, want in zip(outs, refs):
        np.testing.assert_allclose(np.asarray(got), np.asarray(want),
                                   rtol=1e-5, atol=1e-5)

    print("KERNEL_OK")
</pallas_src>

<mosaic_0001>
module attributes {stable_mosaic.version = 11 : i64} {
  func.func @split_embedding_kernel(%arg0: i32, %arg1: memref<8x32xf32, #tpu.memory_space<vmem>>, %arg2: memref<32x64xf32, #tpu.memory_space<vmem>>, %arg3: memref<1x64xf32, #tpu.memory_space<vmem>>, %arg4: memref<64x32xf32, #tpu.memory_space<vmem>>, %arg5: memref<1x32xf32, #tpu.memory_space<vmem>>, %arg6: memref<32x64xf32, #tpu.memory_space<vmem>>, %arg7: memref<1x64xf32, #tpu.memory_space<vmem>>, %arg8: memref<64x48xf32, #tpu.memory_space<vmem>>, %arg9: memref<1x48xf32, #tpu.memory_space<vmem>>, %arg10: memref<8x128xf32, #tpu.memory_space<vmem>>) attributes {dimension_semantics = [#tpu.dimension_semantics<parallel>], iteration_bounds = array<i64: 1>, scalar_prefetch = 0 : i64, scratch_operands = 0 : i64, tpu.core_type = #tpu.core_type<tc>, window_params = [{transform_indices = @transform_0, window_bounds = array<i64: 8, 32>}, {pipeline_mode = #tpu.pipeline_mode<synchronous>, transform_indices = @transform_1, window_bounds = array<i64: 32, 64>}, {pipeline_mode = #tpu.pipeline_mode<synchronous>, transform_indices = @transform_2, window_bounds = array<i64: 1, 64>}, {pipeline_mode = #tpu.pipeline_mode<synchronous>, transform_indices = @transform_3, window_bounds = array<i64: 64, 32>}, {pipeline_mode = #tpu.pipeline_mode<synchronous>, transform_indices = @transform_4, window_bounds = array<i64: 1, 32>}, {pipeline_mode = #tpu.pipeline_mode<synchronous>, transform_indices = @transform_5, window_bounds = array<i64: 32, 64>}, {pipeline_mode = #tpu.pipeline_mode<synchronous>, transform_indices = @transform_6, window_bounds = array<i64: 1, 64>}, {pipeline_mode = #tpu.pipeline_mode<synchronous>, transform_indices = @transform_7, window_bounds = array<i64: 64, 48>}, {pipeline_mode = #tpu.pipeline_mode<synchronous>, transform_indices = @transform_8, window_bounds = array<i64: 1, 48>}, {transform_indices = @transform_9, window_bounds = array<i64: 8, 128>}]} {
    %c0 = arith.constant 0 : index
    %c0_0 = arith.constant 0 : index
    %0 = vector.load %arg1[%c0, %c0_0] : memref<8x32xf32, #tpu.memory_space<vmem>>, vector<8x32xf32>
    %c0_1 = arith.constant 0 : index
    %c0_2 = arith.constant 0 : index
    %1 = vector.load %arg2[%c0_1, %c0_2] : memref<32x64xf32, #tpu.memory_space<vmem>>, vector<32x64xf32>
    %cst = arith.constant dense<0.000000e+00> : vector<8x64xf32>
    %2 = tpu.matmul %0, %1, %cst {dimension_numbers = #tpu.dot_dimension_numbers<[1], [0], [0], [1], [0, 0, 1, 1], [], []>} : vector<8x32xf32>, vector<32x64xf32>, vector<8x64xf32> -> vector<8x64xf32>
    %c0_3 = arith.constant 0 : index
    %c0_4 = arith.constant 0 : index
    %3 = vector.load %arg3[%c0_3, %c0_4] : memref<1x64xf32, #tpu.memory_space<vmem>>, vector<1x64xf32>
    %4 = vector.broadcast %3 : vector<1x64xf32> to vector<8x64xf32>
    %5 = arith.addf %2, %4 : vector<8x64xf32>
    %cst_5 = arith.constant 0.000000e+00 : f32
    %6 = vector.broadcast %cst_5 : f32 to vector<8x64xf32>
    %7 = arith.maximumf %5, %6 : vector<8x64xf32>
    %c0_6 = arith.constant 0 : index
    %c0_7 = arith.constant 0 : index
    %8 = vector.load %arg4[%c0_6, %c0_7] : memref<64x32xf32, #tpu.memory_space<vmem>>, vector<64x32xf32>
    %cst_8 = arith.constant dense<0.000000e+00> : vector<8x32xf32>
    %9 = tpu.matmul %7, %8, %cst_8 {dimension_numbers = #tpu.dot_dimension_numbers<[1], [0], [0], [1], [0, 0, 1, 1], [], []>} : vector<8x64xf32>, vector<64x32xf32>, vector<8x32xf32> -> vector<8x32xf32>
    %c0_9 = arith.constant 0 : index
    %c0_10 = arith.constant 0 : index
    %10 = vector.load %arg5[%c0_9, %c0_10] : memref<1x32xf32, #tpu.memory_space<vmem>>, vector<1x32xf32>
    %11 = vector.broadcast %10 : vector<1x32xf32> to vector<8x32xf32>
    %12 = arith.addf %9, %11 : vector<8x32xf32>
    %13 = math.tanh %12 : vector<8x32xf32>
    %c0_11 = arith.constant 0 : index
    %c0_12 = arith.constant 0 : index
    %14 = vector.load %arg6[%c0_11, %c0_12] : memref<32x64xf32, #tpu.memory_space<vmem>>, vector<32x64xf32>
    %cst_13 = arith.constant dense<0.000000e+00> : vector<8x64xf32>
    %15 = tpu.matmul %13, %14, %cst_13 {dimension_numbers = #tpu.dot_dimension_numbers<[1], [0], [0], [1], [0, 0, 1, 1], [], []>} : vector<8x32xf32>, vector<32x64xf32>, vector<8x64xf32> -> vector<8x64xf32>
    %c0_14 = arith.constant 0 : index
    %c0_15 = arith.constant 0 : index
    %16 = vector.load %arg7[%c0_14, %c0_15] : memref<1x64xf32, #tpu.memory_space<vmem>>, vector<1x64xf32>
    %17 = vector.broadcast %16 : vector<1x64xf32> to vector<8x64xf32>
    %18 = arith.addf %15, %17 : vector<8x64xf32>
    %cst_16 = arith.constant 0.000000e+00 : f32
    %19 = vector.broadcast %cst_16 : f32 to vector<8x64xf32>
    %20 = arith.maximumf %18, %19 : vector<8x64xf32>
    %c0_17 = arith.constant 0 : index
    %c0_18 = arith.constant 0 : index
    %21 = vector.load %arg8[%c0_17, %c0_18] : memref<64x48xf32, #tpu.memory_space<vmem>>, vector<64x48xf32>
    %cst_19 = arith.constant dense<0.000000e+00> : vector<8x48xf32>
    %22 = tpu.matmul %20, %21, %cst_19 {dimension_numbers = #tpu.dot_dimension_numbers<[1], [0], [0], [1], [0, 0, 1, 1], [], []>} : vector<8x64xf32>, vector<64x48xf32>, vector<8x48xf32> -> vector<8x48xf32>
    %c0_20 = arith.constant 0 : index
    %c0_21 = arith.constant 0 : index
    %23 = vector.load %arg9[%c0_20, %c0_21] : memref<1x48xf32, #tpu.memory_space<vmem>>, vector<1x48xf32>
    %24 = vector.broadcast %23 : vector<1x48xf32> to vector<8x48xf32>
    %25 = arith.addf %22, %24 : vector<8x48xf32>
    %cst_22 = arith.constant 0.000000e+00 : f32
    %26 = vector.broadcast %cst_22 : f32 to vector<8x48xf32>
    %27 = tpu.concatenate %13, %25, %26 in 1 : vector<8x32xf32>, vector<8x48xf32>, vector<8x48xf32> -> vector<8x128xf32>
    %c0_23 = arith.constant 0 : index
    %c0_24 = arith.constant 0 : index
    %28 = vector.load %arg10[%c0_23, %c0_24] : memref<8x128xf32, #tpu.memory_space<vmem>>, vector<8x128xf32>
    tpu.vector_store %arg10[%c0_23, %c0_24], %27 {strides = array<i32>} : memref<8x128xf32, #tpu.memory_space<vmem>>, vector<8x128xf32>,
    return
  }
  func.func @transform_0(%arg0: i32) -> (i32, i32) {
    %c0_i32 = arith.constant 0 : i32
    %c0_i32_0 = arith.constant 0 : i32
    return %arg0, %c0_i32 : i32, i32
  }
  func.func @transform_1(%arg0: i32) -> (i32, i32) {
    %c0_i32 = arith.constant 0 : i32
    %c0_i32_0 = arith.constant 0 : i32
    %c0_i32_1 = arith.constant 0 : i32
    return %c0_i32, %c0_i32_0 : i32, i32
  }
  func.func @transform_2(%arg0: i32) -> (i32, i32) {
    %c0_i32 = arith.constant 0 : i32
    %c0_i32_0 = arith.constant 0 : i32
    %c0_i32_1 = arith.constant 0 : i32
    return %c0_i32, %c0_i32_0 : i32, i32
  }
  func.func @transform_3(%arg0: i32) -> (i32, i32) {
    %c0_i32 = arith.constant 0 : i32
    %c0_i32_0 = arith.constant 0 : i32
    %c0_i32_1 = arith.constant 0 : i32
    return %c0_i32, %c0_i32_0 : i32, i32
  }
  func.func @transform_4(%arg0: i32) -> (i32, i32) {
    %c0_i32 = arith.constant 0 : i32
    %c0_i32_0 = arith.constant 0 : i32
    %c0_i32_1 = arith.constant 0 : i32
    return %c0_i32, %c0_i32_0 : i32, i32
  }
  func.func @transform_5(%arg0: i32) -> (i32, i32) {
    %c0_i32 = arith.constant 0 : i32
    %c0_i32_0 = arith.constant 0 : i32
    %c0_i32_1 = arith.constant 0 : i32
    return %c0_i32, %c0_i32_0 : i32, i32
  }
  func.func @transform_6(%arg0: i32) -> (i32, i32) {
    %c0_i32 = arith.constant 0 : i32
    %c0_i32_0 = arith.constant 0 : i32
    %c0_i32_1 = arith.constant 0 : i32
    return %c0_i32, %c0_i32_0 : i32, i32
  }
  func.func @transform_7(%arg0: i32) -> (i32, i32) {
    %c0_i32 = arith.constant 0 : i32
    %c0_i32_0 = arith.constant 0 : i32
    %c0_i32_1 = arith.constant 0 : i32
    return %c0_i32, %c0_i32_0 : i32, i32
  }
  func.func @transform_8(%arg0: i32) -> (i32, i32) {
    %c0_i32 = arith.constant 0 : i32
    %c0_i32_0 = arith.constant 0 : i32
    %c0_i32_1 = arith.constant 0 : i32
    return %c0_i32, %c0_i32_0 : i32, i32
  }
  func.func @transform_9(%arg0: i32) -> (i32, i32) {
    %c0_i32 = arith.constant 0 : i32
    %c0_i32_0 = arith.constant 0 : i32
    return %arg0, %c0_i32 : i32, i32
  }
}

</mosaic_0001>

<llo_original>
// kernel: tpu_custom_call.1
$region0: #{tpu_custom_call.1}
  #allocation0 [shape = 'u32[]', space=smem, size = 0x4, offset = 0x4, fixed_abs, tag = 'smem constant byte address 0x4 - core index']
  #allocation1 [shape = 'u32[144,128]{1,0:T(1,128)}', space=vmem, size = 0x12000, scoped, tag = 'internal scratch']
  %s0 = inlined_call_operand.vmem [shape: f32[8,32], index: 0, kind: input, shape index: {}]
  %s1 = inlined_call_operand.vmem [shape: f32[32,64], index: 1, kind: input, shape index: {}]
  %s2 = inlined_call_operand.vmem [shape: f32[1,64], index: 2, kind: input, shape index: {}]
  %s3 = inlined_call_operand.vmem [shape: f32[64,32], index: 3, kind: input, shape index: {}]
  %s4 = inlined_call_operand.vmem [shape: f32[1,32], index: 4, kind: input, shape index: {}]
  %s5 = inlined_call_operand.vmem [shape: f32[32,64], index: 5, kind: input, shape index: {}]
  %s6 = inlined_call_operand.vmem [shape: f32[1,64], index: 6, kind: input, shape index: {}]
  %s7 = inlined_call_operand.vmem [shape: f32[64,48], index: 7, kind: input, shape index: {}]
  %s8 = inlined_call_operand.vmem [shape: f32[1,48], index: 8, kind: input, shape index: {}]
  %s9 = inlined_call_operand.hbm [shape: f32[8,128], index: 9, kind: output, shape index: {}]
  %s10 = sld [smem:[#allocation0]]
  $region46: #{tpu_custom_call.1} parent=0
    _
  %s12 = ssub.s32 1, %s10
  %s13 = scalar_select 0, %s12, %s10
  $region1: #{tpu_custom_call.1} parent=0
    #allocation2 [shape = 'u8[4096]{0}', space=vmem, size = 0x1000, scoped, tag = 'output window, operand 0, single buffered']
    #allocation3 [shape = 's32[1]{0}', space=sflag, size = 0x4, scoped, tag = 'scoped memory for tpu_custom_call.1']
    %14 = vsyncpa [#allocation3], 0
    // Predicated region
    $region2: #{tpu_custom_call.1} parent=1 // pred_check
      _
    $region3: #{tpu_custom_call.1} parent=1 // pred_check_branch
      %16 = sbr.rel (0) target = $region5
    $region4: #{tpu_custom_call.1} parent=1 // pred_region
      _
    $region5: #{tpu_custom_call.1} parent=1 // pred_fallthru
      _
    // Predicated region
    $region6: #{tpu_custom_call.1} parent=1 // pred_check
      _
    $region7: #{tpu_custom_call.1} parent=1 // pred_check_branch
      %18 = sbr.rel (0) target = $region9
    $region8: #{tpu_custom_call.1} parent=1 // pred_region
      _
    $region9: #{tpu_custom_call.1} parent=1 // pred_fallthru
      _
    // Predicated region
    $region10: #{tpu_custom_call.1} parent=1 // pred_check
      _
    $region11: #{tpu_custom_call.1} parent=1 // pred_check_branch
      %20 = sbr.rel (0) target = $region13
    $region12: #{tpu_custom_call.1} parent=1 // pred_region
      _
    $region13: #{tpu_custom_call.1} parent=1 // pred_fallthru
      _
    // Predicated region
    $region14: #{tpu_custom_call.1} parent=1 // pred_check
      _
    $region15: #{tpu_custom_call.1} parent=1 // pred_check_branch
      %22 = sbr.rel (0) target = $region17
    $region16: #{tpu_custom_call.1} parent=1 // pred_region
      _
    $region17: #{tpu_custom_call.1} parent=1 // pred_fallthru
      _
    // Predicated region
    $region18: #{tpu_custom_call.1} parent=1 // pred_check
      _
    $region19: #{tpu_custom_call.1} parent=1 // pred_check_branch
      %24 = sbr.rel (0) target = $region21
    $region20: #{tpu_custom_call.1} parent=1 // pred_region
      _
    $region21: #{tpu_custom_call.1} parent=1 // pred_fallthru
      _
    // Predicated region
    $region22: #{tpu_custom_call.1} parent=1 // pred_check
      _
    $region23: #{tpu_custom_call.1} parent=1 // pred_check_branch
      %26 = sbr.rel (0) target = $region25
    $region24: #{tpu_custom_call.1} parent=1 // pred_region
      _
    $region25: #{tpu_custom_call.1} parent=1 // pred_fallthru
      _
    // Predicated region
    $region26: #{tpu_custom_call.1} parent=1 // pred_check
      _
    $region27: #{tpu_custom_call.1} parent=1 // pred_check_branch
      %28 = sbr.rel (0) target = $region29
    $region28: #{tpu_custom_call.1} parent=1 // pred_region
      _
    $region29: #{tpu_custom_call.1} parent=1 // pred_fallthru
      _
    // Predicated region
    $region30: #{tpu_custom_call.1} parent=1 // pred_check
      _
    $region31: #{tpu_custom_call.1} parent=1 // pred_check_branch
      %30 = sbr.rel (0) target = $region33
    $region32: #{tpu_custom_call.1} parent=1 // pred_region
      _
    $region33: #{tpu_custom_call.1} parent=1 // pred_fallthru
      _
    // Predicated region
    $region34: #{tpu_custom_call.1} parent=1 // pred_check
      _
    $region35: #{tpu_custom_call.1} parent=1 // pred_check_branch
      %32 = sbr.rel (0) target = $region37
    $region36: #{tpu_custom_call.1} parent=1 // pred_region
      _
    $region37: #{tpu_custom_call.1} parent=1 // pred_fallthru
      _
    %v33 = vld [vmem:[%s0] sm:$0xff]
    %v34 = vld [vmem:[%s1] sm:$0xff]
    %v35 = vld [vmem:[%s1 + $0x8] sm:$0xff]
    %v36 = vld [vmem:[%s1 + $0x10] sm:$0xff]
    %v37 = vld [vmem:[%s1 + $0x18] sm:$0xff]
    %v38 = vld [vmem:[%s2] sm:$0x1]
    %v40 = vlaneseq
    %v41 = vshrl.u32 %v40, 7
    %v42 = vsub.s32 0, %v41
    %v43 = vrot.slane %v38, %v42
    %vm45 = vcmask 261120
    %v47 = vsel %vm45, %v33, 0
    %49 = vmatprep.subr.mxu0 0.0
    %50 = vmatpush1.msra.mxu0 %v34
    %51 = vmatprep.subr.mxu0 0.0
    %52 = vmatpush1.msra.mxu0 %v35
    %53 = vmatprep.subr.mxu0 0.0
    %54 = vmatpush1.msra.mxu0 %v36
    %55 = vmatprep.subr.mxu0 0.0
    %56 = vmatpush1.msra.mxu0 %v37
    %57 = vmatprep.subr.mxu0 0.0
    %58 = vmatpush1.msra.mxu0 0.0
    %59 = vmatprep.subr.mxu0 0.0
    %60 = vmatpush1.msra.mxu0 0.0
    %61 = vmatprep.subr.mxu0 0.0
    %62 = vmatpush1.msra.mxu0 0.0
    %63 = vmatprep.subr.mxu0 0.0
    %64 = vmatpush1.msra.mxu0 0.0
    %65 = vmatprep.subr.mxu0 0.0
    %66 = vmatpush1.msra.mxu0 0.0
    %67 = vmatprep.subr.mxu0 0.0
    %68 = vmatpush1.msra.mxu0 0.0
    %69 = vmatprep.subr.mxu0 0.0
    %70 = vmatpush1.msra.mxu0 0.0
    %71 = vmatprep.subr.mxu0 0.0
    %72 = vmatpush1.msra.mxu0 0.0
    %73 = vmatprep.subr.mxu0 0.0
    %74 = vmatpush1.msra.mxu0 0.0
    %75 = vmatprep.subr.mxu0 0.0
    %76 = vmatpush1.msra.mxu0 0.0
    %77 = vmatprep.subr.mxu0 0.0
    %78 = vmatpush1.msra.mxu0 0.0
    %79 = vmatprep.subr.mxu0 0.0
    %80 = vmatpush1.msra.mxu0 0.0
    %81 = vmatprep.subr.mxu0 0.0
    %82 = vmatpush1.msra.mxu0 0.0
    %83 = vmatprep.subr.mxu0 0.0
    %84 = vmatpush1.msra.mxu0 0.0
    %85 = vmatprep.subr.mxu0 0.0
    %86 = vmatpush1.msra.mxu0 0.0
    %87 = vmatprep.subr.mxu0 0.0
    %88 = vmatpush1.msra.mxu0 0.0
    %89 = vmatprep.subr.mxu0 0.0
    %90 = vmatpush1.msra.mxu0 0.0
    %91 = vmatprep.subr.mxu0 0.0
    %92 = vmatpush1.msra.mxu0 0.0
    %93 = vmatprep.subr.mxu0 0.0
    %94 = vmatpush1.msra.mxu0 0.0
    %95 = vmatprep.subr.mxu0 0.0
    %96 = vmatpush1.msra.mxu0 0.0
    %97 = vmatprep.subr.mxu0 0.0
    %98 = vmatpush1.msra.mxu0 0.0
    %99 = vmatprep.subr.mxu0 0.0
    %100 = vmatpush1.msra.mxu0 0.0
    %101 = vmatprep.subr.mxu0 0.0
    %102 = vmatpush1.msra.mxu0 0.0
    %103 = vmatprep.subr.mxu0 0.0
    %104 = vmatpush1.msra.mxu0 0.0
    %105 = vmatprep.subr.mxu0 0.0
    %106 = vmatpush1.msra.mxu0 0.0
    %107 = vmatprep.subr.mxu0 0.0
    %108 = vmatpush1.msra.mxu0 0.0
    %109 = vmatprep.subr.mxu0 0.0
    %110 = vmatpush1.msra.mxu0 0.0
    %111 = vmatprep.subr.mxu0 0.0
    %112 = vmatpush1.msra.mxu0 0.0
    %113 = vmatprep.mubr.f32.mxu0 0.0
    %114 = vmatmul.mubr.f32.gmra.mrb[0].mxu0 %v47
    %v115 = vpop.f32.mrb[0].mxu0
    %v116 = vadd.f32 %v43, %v115
    %v117 = vpop.f32.mrb[0].mxu0
    %118 = vdwg.mxu0
    %v119 = vmax.f32 %v116, 0.0
    %v120 = vld [vmem:[%s3] sm:$0xff]
    %v121 = vld [vmem:[%s3 + $0x8] sm:$0xff]
    %v122 = vld [vmem:[%s3 + $0x10] sm:$0xff]
    %v123 = vld [vmem:[%s3 + $0x18] sm:$0xff]
    %v124 = vld [vmem:[%s3 + $0x20] sm:$0xff]
    %v125 = vld [vmem:[%s3 + $0x28] sm:$0xff]
    %v126 = vld [vmem:[%s3 + $0x30] sm:$0xff]
    %v127 = vld [vmem:[%s3 + $0x38] sm:$0xff]
    %v128 = vld [vmem:[%s4] sm:$0x1]
    %v130 = vlaneseq
    %v131 = vshrl.u32 %v130, 7
    %v132 = vsub.s32 0, %v131
    %v133 = vrot.slane %v128, %v132
    %vm135 = vcmask 523264
    %v137 = vsel %vm135, %v119, 0
    %139 = vmatprep.subr.mxu0 0.0
    %140 = vmatpush1.msra.mxu0 %v120
    %141 = vmatprep.subr.mxu0 0.0
    %142 = vmatpush1.msra.mxu0 %v121
    %143 = vmatprep.subr.mxu0 0.0
    %144 = vmatpush1.msra.mxu0 %v122
    %145 = vmatprep.subr.mxu0 0.0
    %146 = vmatpush1.msra.mxu0 %v123
    %147 = vmatprep.subr.mxu0 0.0
    %148 = vmatpush1.msra.mxu0 %v124
    %149 = vmatprep.subr.mxu0 0.0
    %150 = vmatpush1.msra.mxu0 %v125
    %151 = vmatprep.subr.mxu0 0.0
    %152 = vmatpush1.msra.mxu0 %v126
    %153 = vmatprep.subr.mxu0 0.0
    %154 = vmatpush1.msra.mxu0 %v127
    %155 = vmatprep.subr.mxu0 0.0
    %156 = vmatpush1.msra.mxu0 0.0
    %157 = vmatprep.subr.mxu0 0.0
    %158 = vmatpush1.msra.mxu0 0.0
    %159 = vmatprep.subr.mxu0 0.0
    %160 = vmatpush1.msra.mxu0 0.0
    %161 = vmatprep.subr.mxu0 0.0
    %162 = vmatpush1.msra.mxu0 0.0
    %163 = vmatprep.subr.mxu0 0.0
    %164 = vmatpush1.msra.mxu0 0.0
    %165 = vmatprep.subr.mxu0 0.0
    %166 = vmatpush1.msra.mxu0 0.0
    %167 = vmatprep.subr.mxu0 0.0
    %168 = vmatpush1.msra.mxu0 0.0
    %169 = vmatprep.subr.mxu0 0.0
    %170 = vmatpush1.msra.mxu0 0.0
    %171 = vmatprep.subr.mxu0 0.0
    %172 = vmatpush1.msra.mxu0 0.0
    %173 = vmatprep.subr.mxu0 0.0
    %174 = vmatpush1.msra.mxu0 0.0
    %175 = vmatprep.subr.mxu0 0.0
    %176 = vmatpush1.msra.mxu0 0.0
    %177 = vmatprep.subr.mxu0 0.0
    %178 = vmatpush1.msra.mxu0 0.0
    %179 = vmatprep.subr.mxu0 0.0
    %180 = vmatpush1.msra.mxu0 0.0
    %181 = vmatprep.subr.mxu0 0.0
    %182 = vmatpush1.msra.mxu0 0.0
    %183 = vmatprep.subr.mxu0 0.0
    %184 = vmatpush1.msra.mxu0 0.0
    %185 = vmatprep.subr.mxu0 0.0
    %186 = vmatpush1.msra.mxu0 0.0
    %187 = vmatprep.subr.mxu0 0.0
    %188 = vmatpush1.msra.mxu0 0.0
    %189 = vmatprep.subr.mxu0 0.0
    %190 = vmatpush1.msra.mxu0 0.0
    %191 = vmatprep.subr.mxu0 0.0
    %192 = vmatpush1.msra.mxu0 0.0
    %193 = vmatprep.subr.mxu0 0.0
    %194 = vmatpush1.msra.mxu0 0.0
    %195 = vmatprep.subr.mxu0 0.0
    %196 = vmatpush1.msra.mxu0 0.0
    %197 = vmatprep.subr.mxu0 0.0
    %198 = vmatpush1.msra.mxu0 0.0
    %199 = vmatprep.subr.mxu0 0.0
    %200 = vmatpush1.msra.mxu0 0.0
    %201 = vmatprep.subr.mxu0 0.0
    %202 = vmatpush1.msra.mxu0 0.0
    %203 = vmatprep.mubr.f32.mxu0 0.0
    %204 = vmatmul.mubr.f32.gmra.mrb[0].mxu0 %v137
    %v205 = vpop.f32.mrb[0].mxu0
    %v206 = vadd.f32 %v133, %v205
    %v207 = vpop.f32.mrb[0].mxu0
    %208 = vdwg.mxu0
    %v209 = vtanh.pop %v206
    %v210 = vld [vmem:[%s5] sm:$0xff]
    %v211 = vld [vmem:[%s5 + $0x8] sm:$0xff]
    %v212 = vld [vmem:[%s5 + $0x10] sm:$0xff]
    %v213 = vld [vmem:[%s5 + $0x18] sm:$0xff]
    %v214 = vld [vmem:[%s6] sm:$0x1]
    %v216 = vlaneseq
    %v217 = vshrl.u32 %v216, 7
    %v218 = vsub.s32 0, %v217
    %v219 = vrot.slane %v214, %v218
    %v222 = vsel %vm45, %v209, 0
    %224 = vmatprep.subr.mxu0 0.0
    %225 = vmatpush1.msra.mxu0 %v210
    %226 = vmatprep.subr.mxu0 0.0
    %227 = vmatpush1.msra.mxu0 %v211
    %228 = vmatprep.subr.mxu0 0.0
    %229 = vmatpush1.msra.mxu0 %v212
    %230 = vmatprep.subr.mxu0 0.0
    %231 = vmatpush1.msra.mxu0 %v213
    %232 = vmatprep.subr.mxu0 0.0
    %233 = vmatpush1.msra.mxu0 0.0
    %234 = vmatprep.subr.mxu0 0.0
    %235 = vmatpush1.msra.mxu0 0.0
    %236 = vmatprep.subr.mxu0 0.0
    %237 = vmatpush1.msra.mxu0 0.0
    %238 = vmatprep.subr.mxu0 0.0
    %239 = vmatpush1.msra.mxu0 0.0
    %240 = vmatprep.subr.mxu0 0.0
    %241 = vmatpush1.msra.mxu0 0.0
    %242 = vmatprep.subr.mxu0 0.0
    %243 = vmatpush1.msra.mxu0 0.0
    %244 = vmatprep.subr.mxu0 0.0
    %245 = vmatpush1.msra.mxu0 0.0
    %246 = vmatprep.subr.mxu0 0.0
    %247 = vmatpush1.msra.mxu0 0.0
    %248 = vmatprep.subr.mxu0 0.0
    %249 = vmatpush1.msra.mxu0 0.0
    %250 = vmatprep.subr.mxu0 0.0
    %251 = vmatpush1.msra.mxu0 0.0
    %252 = vmatprep.subr.mxu0 0.0
    %253 = vmatpush1.msra.mxu0 0.0
    %254 = vmatprep.subr.mxu0 0.0
    %255 = vmatpush1.msra.mxu0 0.0
    %256 = vmatprep.subr.mxu0 0.0
    %257 = vmatpush1.msra.mxu0 0.0
    %258 = vmatprep.subr.mxu0 0.0
    %259 = vmatpush1.msra.mxu0 0.0
    %260 = vmatprep.subr.mxu0 0.0
    %261 = vmatpush1.msra.mxu0 0.0
    %262 = vmatprep.subr.mxu0 0.0
    %263 = vmatpush1.msra.mxu0 0.0
    %264 = vmatprep.subr.mxu0 0.0
    %265 = vmatpush1.msra.mxu0 0.0
    %266 = vmatprep.subr.mxu0 0.0
    %267 = vmatpush1.msra.mxu0 0.0
    %268 = vmatprep.subr.mxu0 0.0
    %269 = vmatpush1.msra.mxu0 0.0
    %270 = vmatprep.subr.mxu0 0.0
    %271 = vmatpush1.msra.mxu0 0.0
    %272 = vmatprep.subr.mxu0 0.0
    %273 = vmatpush1.msra.mxu0 0.0
    %274 = vmatprep.subr.mxu0 0.0
    %275 = vmatpush1.msra.mxu0 0.0
    %276 = vmatprep.subr.mxu0 0.0
    %277 = vmatpush1.msra.mxu0 0.0
    %278 = vmatprep.subr.mxu0 0.0
    %279 = vmatpush1.msra.mxu0 0.0
    %280 = vmatprep.subr.mxu0 0.0
    %281 = vmatpush1.msra.mxu0 0.0
    %282 = vmatprep.subr.mxu0 0.0
    %283 = vmatpush1.msra.mxu0 0.0
    %284 = vmatprep.subr.mxu0 0.0
    %285 = vmatpush1.msra.mxu0 0.0
    %286 = vmatprep.subr.mxu0 0.0
    %287 = vmatpush1.msra.mxu0 0.0
    %288 = vmatprep.mubr.f32.mxu0 0.0
    %289 = vmatmul.mubr.f32.gmra.mrb[0].mxu0 %v222
    %v290 = vpop.f32.mrb[0].mxu0
    %v291 = vadd.f32 %v219, %v290
    %v292 = vpop.f32.mrb[0].mxu0
    %293 = vdwg.mxu0
    %v294 = vmax.f32 %v291, 0.0
    %v295 = vld [vmem:[%s7] sm:$0xff]
    %v296 = vld [vmem:[%s7 + $0x8] sm:$0xff]
    %v297 = vld [vmem:[%s7 + $0x10] sm:$0xff]
    %v298 = vld [vmem:[%s7 + $0x18] sm:$0xff]
    %v299 = vld [vmem:[%s7 + $0x20] sm:$0xff]
    %v300 = vld [vmem:[%s7 + $0x28] sm:$0xff]
    %v301 = vld [vmem:[%s7 + $0x30] sm:$0xff]
    %v302 = vld [vmem:[%s7 + $0x38] sm:$0xff]
    %v303 = vld [vmem:[%s8] sm:$0x1]
    %v305 = vlaneseq
    %v306 = vshrl.u32 %v305, 7
    %v307 = vsub.s32 0, %v306
    %v308 = vrot.slane %v303, %v307
    %v311 = vsel %vm135, %v294, 0
    %313 = vmatprep.subr.mxu0 0.0
    %314 = vmatpush1.msra.mxu0 %v295
    %315 = vmatprep.subr.mxu0 0.0
    %316 = vmatpush1.msra.mxu0 %v296
    %317 = vmatprep.subr.mxu0 0.0
    %318 = vmatpush1.msra.mxu0 %v297
    %319 = vmatprep.subr.mxu0 0.0
    %320 = vmatpush1.msra.mxu0 %v298
    %321 = vmatprep.subr.mxu0 0.0
    %322 = vmatpush1.msra.mxu0 %v299
    %323 = vmatprep.subr.mxu0 0.0
    %324 = vmatpush1.msra.mxu0 %v300
    %325 = vmatprep.subr.mxu0 0.0
    %326 = vmatpush1.msra.mxu0 %v301
    %327 = vmatprep.subr.mxu0 0.0
    %328 = vmatpush1.msra.mxu0 %v302
    %329 = vmatprep.subr.mxu0 0.0
    %330 = vmatpush1.msra.mxu0 0.0
    %331 = vmatprep.subr.mxu0 0.0
    %332 = vmatpush1.msra.mxu0 0.0
    %333 = vmatprep.subr.mxu0 0.0
    %334 = vmatpush1.msra.mxu0 0.0
    %335 = vmatprep.subr.mxu0 0.0
    %336 = vmatpush1.msra.mxu0 0.0
    %337 = vmatprep.subr.mxu0 0.0
    %338 = vmatpush1.msra.mxu0 0.0
    %339 = vmatprep.subr.mxu0 0.0
    %340 = vmatpush1.msra.mxu0 0.0
    %341 = vmatprep.subr.mxu0 0.0
    %342 = vmatpush1.msra.mxu0 0.0
    %343 = vmatprep.subr.mxu0 0.0
    %344 = vmatpush1.msra.mxu0 0.0
    %345 = vmatprep.subr.mxu0 0.0
    %346 = vmatpush1.msra.mxu0 0.0
    %347 = vmatprep.subr.mxu0 0.0
    %348 = vmatpush1.msra.mxu0 0.0
    %349 = vmatprep.subr.mxu0 0.0
    %350 = vmatpush1.msra.mxu0 0.0
    %351 = vmatprep.subr.mxu0 0.0
    %352 = vmatpush1.msra.mxu0 0.0
    %353 = vmatprep.subr.mxu0 0.0
    %354 = vmatpush1.msra.mxu0 0.0
    %355 = vmatprep.subr.mxu0 0.0
    %356 = vmatpush1.msra.mxu0 0.0
    %357 = vmatprep.subr.mxu0 0.0
    %358 = vmatpush1.msra.mxu0 0.0
    %359 = vmatprep.subr.mxu0 0.0
    %360 = vmatpush1.msra.mxu0 0.0
    %361 = vmatprep.subr.mxu0 0.0
    %362 = vmatpush1.msra.mxu0 0.0
    %363 = vmatprep.subr.mxu0 0.0
    %364 = vmatpush1.msra.mxu0 0.0
    %365 = vmatprep.subr.mxu0 0.0
    %366 = vmatpush1.msra.mxu0 0.0
    %367 = vmatprep.subr.mxu0 0.0
    %368 = vmatpush1.msra.mxu0 0.0
    %369 = vmatprep.subr.mxu0 0.0
    %370 = vmatpush1.msra.mxu0 0.0
    %371 = vmatprep.subr.mxu0 0.0
    %372 = vmatpush1.msra.mxu0 0.0
    %373 = vmatprep.subr.mxu0 0.0
    %374 = vmatpush1.msra.mxu0 0.0
    %375 = vmatprep.subr.mxu0 0.0
    %376 = vmatpush1.msra.mxu0 0.0
    %377 = vmatprep.mubr.f32.mxu0 0.0
    %378 = vmatmul.mubr.f32.gmra.mrb[0].mxu0 %v311
    %v379 = vpop.f32.mrb[0].mxu0
    %v380 = vadd.f32 %v308, %v379
    %v381 = vpop.f32.mrb[0].mxu0
    %382 = vdwg.mxu0
    %384 = vrot.lane.b32.xlu0 %v380, 32
    %v385 = vpop.permute.xlu0 %384
    %v387 = vsel %vm45, %v209, %v385
    %vm388 = vcmask 654336
    %v389 = vsel %vm388, %v387, 0.0
    %390 = vst [vmem:[#allocation2] sm:$0xff] %v389
    // Predicated region
    $region38: #{tpu_custom_call.1} parent=1 // pred_check
      _
    $region39: #{tpu_custom_call.1} parent=1 // pred_check_branch
      %392 = sbr.rel (0) target = $region41
    $region40: #{tpu_custom_call.1} parent=1 // pred_region
      %s394 = ssub.s32 128, 128
      %395 = vsyncadd [#allocation3], %s394
      %s397 = sshll.u32 [#allocation2], 4
      %s398 = int_to_ptr.vmem [resolvable:$true] %s397
      %400 = dma.vmem_to_hbm [thread:$0]  %s398, 128, %s9, [#allocation3]
    $region41: #{tpu_custom_call.1} parent=1 // pred_fallthru
      _
    // Predicated region
    $region42: #{tpu_custom_call.1} parent=1 // pred_check
      _
    $region43: #{tpu_custom_call.1} parent=1 // pred_check_branch
      %402 = sbr.rel (0) target = $region45
    $region44: #{tpu_custom_call.1} parent=1 // pred_region
      %403 = dma.done [#allocation3], 128
    $region45: #{tpu_custom_call.1} parent=1 // pred_fallthru
      _
    %404 = vsyncpa [#allocation3], 1

</llo_original>
